<compile_context>
chip_gen: v5e
topology: v5e:2x2
jax: 0.10.0
libtpu: 0.0.40
codegen_flags: <defaults>
</compile_context>

<pallas_src>
import jax
import jax.numpy as jnp
from jax.experimental import pallas as pl
from jax.experimental.pallas import tpu as pltpu

N_STATES = 3
N_ACTIONS = 1
HIDDEN = 50
IN_DIM = N_STATES + N_ACTIONS          # 4

LANES = 128                            # fused hidden width 2*50=100, padded to 128
# ---- slab layout (feature-major, everything pre-transposed at pack time) ----
# rows   0:128  "L1 region": cols 0:4 = fused W1^T, col 4 = fused b1,
#                            col 5 = fused b2, col 6 rows 0:2 = b3 (q1, q2)
# rows 128:256  fused block-diagonal W2^T  (128 x 128)
# rows 256:258  fused W3^T (row 0 = q1 head, row 1 = q2 head); rows 258:264 pad
_B1_COL = 4
_B2_COL = 5
_B3_COL = 6
_W2_START = LANES                      # 128
_W3_START = 2 * LANES                  # 256
SLAB_ROWS = 2 * LANES + 8              # 264 (multiple of 8)


def _round_up(x, m):
    return ((x + m - 1) // m) * m


def _critic_kernel(x_ref, slab_ref, out_ref):
    # x_ref:    (4, tb)   f32, feature-major [state0..2 ; action]
    # slab_ref: (264,128) bf16, resident packed parameters
    # out_ref:  (2, tb)   f32, row 0 = q1, row 1 = q2   (lane-dense writeback)
    x = x_ref[...].astype(jnp.bfloat16)                             # (4, tb)

    w1t = slab_ref[0:LANES, 0:IN_DIM]                               # (128, 4) bf16
    b1 = slab_ref[0:LANES, _B1_COL:_B1_COL + 1].astype(jnp.float32)  # (128, 1)
    b2 = slab_ref[0:LANES, _B2_COL:_B2_COL + 1].astype(jnp.float32)  # (128, 1)
    b3 = slab_ref[0:2, _B3_COL:_B3_COL + 1].astype(jnp.float32)      # (2, 1)

    # ---- Layer 1 (fused heads, concat folded into the packed W1^T).
    h = jnp.dot(w1t, x, preferred_element_type=jnp.float32) + b1    # (128, tb)
    h = jnp.maximum(h, 0.0)                                         # rows 100:128 stay 0

    # ---- Layer 2: one bf16 MXU pass over the block-diagonal fused W2^T.
    w2t = slab_ref[_W2_START:_W2_START + LANES, :]                  # (128, 128) bf16
    h = jnp.dot(w2t, h.astype(jnp.bfloat16),
                preferred_element_type=jnp.float32) + b2
    h = jnp.maximum(h, 0.0)

    # ---- Layer 3: tiny (2,128)@(128,tb) dot -> result already feature-major.
    w3t = slab_ref[_W3_START:_W3_START + 2, :]                      # (2, 128) bf16
    q = jnp.dot(w3t, h.astype(jnp.bfloat16),
                preferred_element_type=jnp.float32) + b3            # (2, tb)

    out_ref[...] = q.astype(out_ref.dtype)


def critic_forward(state, action, slab, *, block_cols=512):
    """Pallas-backed twin-critic forward.

    state: (B, 3), action: (B, 1), slab: packed params from pack_critic_params.
    Returns (q1, q2), each (B, 1) float32.
    """
    B = state.shape[0]

    # Single lane-dense, feature-major input stream (tiny wrapper-side op).
    x_t = jnp.concatenate([state, action], axis=1).T.astype(jnp.float32)  # (4, B)

    # Batch tile: whole batch for tiny B (block == full array dims), otherwise a
    # multiple of 128 lanes with at least 2 grid steps so the "parallel" batch
    # axis can be split across both TensorCores on v7x.  block_cols kept in the
    # 256-1024 sweet spot (sweepable); well under v5e's default scoped VMEM.
    if B <= LANES:
        tb = B
    else:
        tb = min(_round_up(block_cols, LANES),
                 max(LANES, _round_up(pl.cdiv(B, 2), LANES)))
    grid = (pl.cdiv(B, tb),)

    out = pl.pallas_call(
        _critic_kernel,
        out_shape=jax.ShapeDtypeStruct((2, B), jnp.float32),
        grid=grid,
        in_specs=[
            pl.BlockSpec((IN_DIM, tb), lambda i: (0, i)),
            # Single aligned bf16 parameter slab; same block index every step
            # -> fetched once and stays resident in VMEM.
            pl.BlockSpec((SLAB_ROWS, LANES), lambda i: (0, 0)),
        ],
        out_specs=pl.BlockSpec((2, tb), lambda i: (0, i)),
        compiler_params=pltpu.CompilerParams(
            dimension_semantics=("parallel",)),
    )(x_t, slab)

    q1 = out[0, :, None]   # (B, 1)
    q2 = out[1, :, None]   # (B, 1)
    return q1, q2


def _init_linear(key, fan_in, fan_out):
    """Deterministic init mimicking torch.nn.Linear default (uniform +/- 1/sqrt(fan_in))."""
    kw, kb = jax.random.split(key)
    bound = 1.0 / jnp.sqrt(jnp.float32(fan_in))
    # Stored as (in, out) so the reference forward is x @ W + b (== PyTorch x @ W.T + b).
    w = jax.random.uniform(kw, (fan_in, fan_out), jnp.float32, -bound, bound)
    b = jax.random.uniform(kb, (1, fan_out), jnp.float32, -bound, bound)
    return w, b


def init_critic_params(key):
    keys = jax.random.split(key, 6)
    # Q1 head
    w1a, b1a = _init_linear(keys[0], IN_DIM, HIDDEN)
    w2a, b2a = _init_linear(keys[1], HIDDEN, HIDDEN)
    w3a, b3a = _init_linear(keys[2], HIDDEN, 1)
    # Q2 head
    w1b, b1b = _init_linear(keys[3], IN_DIM, HIDDEN)
    w2b, b2b = _init_linear(keys[4], HIDDEN, HIDDEN)
    w3b, b3b = _init_linear(keys[5], HIDDEN, 1)
    return (w1a, b1a, w2a, b2a, w3a, b3a,
            w1b, b1b, w2b, b2b, w3b, b3b)


def pack_critic_params(params):
    """One-time repack of the 12 per-layer tensors into one (264,128) bf16 slab
    laid out feature-major (all weights pre-transposed)."""
    (w1a, b1a, w2a, b2a, w3a, b3a,
     w1b, b1b, w2b, b2b, w3b, b3b) = params
    H = HIDDEN
    slab = jnp.zeros((SLAB_ROWS, LANES), jnp.float32)
    # L1 region: fused W1^T in cols 0:4 (rows = fused hidden features).
    slab = slab.at[0:H, 0:IN_DIM].set(w1a.T)
    slab = slab.at[H:2 * H, 0:IN_DIM].set(w1b.T)
    # Fused biases as columns of the L1 region.
    slab = slab.at[0:H, _B1_COL].set(b1a[0])
    slab = slab.at[H:2 * H, _B1_COL].set(b1b[0])
    slab = slab.at[0:H, _B2_COL].set(b2a[0])
    slab = slab.at[H:2 * H, _B2_COL].set(b2b[0])
    slab = slab.at[0, _B3_COL].set(b3a[0, 0])
    slab = slab.at[1, _B3_COL].set(b3b[0, 0])
    # Block-diagonal fused W2^T (keeps the two heads independent).
    slab = slab.at[_W2_START:_W2_START + H, 0:H].set(w2a.T)
    slab = slab.at[_W2_START + H:_W2_START + 2 * H, H:2 * H].set(w2b.T)
    # Fused W3^T: row 0 = q1 head weights, row 1 = q2 head weights.
    slab = slab.at[_W3_START, 0:H].set(w3a[:, 0])
    slab = slab.at[_W3_START + 1, H:2 * H].set(w3b[:, 0])
    return slab.astype(jnp.bfloat16)


def _reference_forward(state, action, params):
    (w1a, b1a, w2a, b2a, w3a, b3a,
     w1b, b1b, w2b, b2b, w3b, b3b) = params
    x = jnp.concatenate([state, action], axis=1)
    h = jnp.maximum(x @ w1a + b1a, 0.0)
    h = jnp.maximum(h @ w2a + b2a, 0.0)
    q1 = h @ w3a + b3a
    g = jnp.maximum(x @ w1b + b1b, 0.0)
    g = jnp.maximum(g @ w2b + b2b, 0.0)
    q2 = g @ w3b + b3b
    return q1, q2


if __name__ == "__main__":
    key = jax.random.PRNGKey(0)
    k_params, k_state, k_action = jax.random.split(key, 3)

    params = init_critic_params(k_params)
    slab = pack_critic_params(params)   # one-time repack (amortized across calls)

    # bf16 matmuls with f32 accumulation -> loosened tolerances (conscious choice
    # per the perf review; acceptable for an RL critic).
    ATOL = 3e-2
    RTOL = 3e-2

    # Small batch, shapes implied by Pendulum-v0 (state dim 3, action dim 1).
    B = 2
    state = jax.random.normal(k_state, (B, N_STATES), jnp.float32)
    action = jax.random.normal(k_action, (B, N_ACTIONS), jnp.float32)

    q1, q2 = critic_forward(state, action, slab)
    q1 = jax.block_until_ready(q1)
    q2 = jax.block_until_ready(q2)

    r1, r2 = _reference_forward(state, action, params)
    assert q1.shape == (B, 1) and q2.shape == (B, 1)
    assert jnp.allclose(q1, r1, atol=ATOL, rtol=RTOL)
    assert jnp.allclose(q2, r2, atol=ATOL, rtol=RTOL)

    # Also exercise the multi-block grid path (>=2 parallel steps + partial tail block).
    B2 = 300
    k_s2, k_a2 = jax.random.split(jax.random.PRNGKey(1))
    state2 = jax.random.normal(k_s2, (B2, N_STATES), jnp.float32)
    action2 = jax.random.normal(k_a2, (B2, N_ACTIONS), jnp.float32)
    p1, p2 = critic_forward(state2, action2, slab)
    p1 = jax.block_until_ready(p1)
    p2 = jax.block_until_ready(p2)
    s1, s2 = _reference_forward(state2, action2, params)
    assert p1.shape == (B2, 1) and p2.shape == (B2, 1)
    assert jnp.allclose(p1, s1, atol=ATOL, rtol=RTOL)
    assert jnp.allclose(p2, s2, atol=ATOL, rtol=RTOL)

    print("KERNEL_OK")
</pallas_src>

<mosaic_0001>
module attributes {stable_mosaic.version = 11 : i64} {
  func.func @_critic_kernel(%arg0: i32, %arg1: memref<4x2xf32, #tpu.memory_space<vmem>>, %arg2: memref<264x128xbf16, #tpu.memory_space<vmem>>, %arg3: memref<2x2xf32, #tpu.memory_space<vmem>>) attributes {dimension_semantics = [#tpu.dimension_semantics<parallel>], iteration_bounds = array<i64: 1>, scalar_prefetch = 0 : i64, scratch_operands = 0 : i64, tpu.core_type = #tpu.core_type<tc>, window_params = [{transform_indices = @transform_0, window_bounds = array<i64: 4, 2>}, {pipeline_mode = #tpu.pipeline_mode<synchronous>, transform_indices = @transform_1, window_bounds = array<i64: 264, 128>}, {transform_indices = @transform_2, window_bounds = array<i64: 2, 2>}]} {
    %c0 = arith.constant 0 : index
    %c0_0 = arith.constant 0 : index
    %0 = vector.load %arg1[%c0, %c0_0] : memref<4x2xf32, #tpu.memory_space<vmem>>, vector<4x2xf32>
    %1 = arith.truncf %0 : vector<4x2xf32> to vector<4x2xbf16>
    %c0_1 = arith.constant 0 : index
    %c0_2 = arith.constant 0 : index
    %2 = vector.load %arg2[%c0_1, %c0_2] : memref<264x128xbf16, #tpu.memory_space<vmem>>, vector<128x4xbf16>
    %c0_3 = arith.constant 0 : index
    %c4 = arith.constant 4 : index
    %3 = vector.load %arg2[%c0_3, %c4] : memref<264x128xbf16, #tpu.memory_space<vmem>>, vector<128x1xbf16>
    %4 = arith.extf %3 : vector<128x1xbf16> to vector<128x1xf32>
    %c0_4 = arith.constant 0 : index
    %c5 = arith.constant 5 : index
    %5 = vector.load %arg2[%c0_4, %c5] : memref<264x128xbf16, #tpu.memory_space<vmem>>, vector<128x1xbf16>
    %6 = arith.extf %5 : vector<128x1xbf16> to vector<128x1xf32>
    %c0_5 = arith.constant 0 : index
    %c6 = arith.constant 6 : index
    %7 = vector.load %arg2[%c0_5, %c6] : memref<264x128xbf16, #tpu.memory_space<vmem>>, vector<2x1xbf16>
    %8 = arith.extf %7 : vector<2x1xbf16> to vector<2x1xf32>
    %cst = arith.constant dense<0.000000e+00> : vector<128x2xf32>
    %9 = tpu.matmul %2, %1, %cst {dimension_numbers = #tpu.dot_dimension_numbers<[1], [0], [0], [1], [0, 0, 1, 1], [], []>} : vector<128x4xbf16>, vector<4x2xbf16>, vector<128x2xf32> -> vector<128x2xf32>
    %10 = vector.broadcast %4 : vector<128x1xf32> to vector<128x2xf32>
    %11 = arith.addf %9, %10 : vector<128x2xf32>
    %cst_6 = arith.constant 0.000000e+00 : f32
    %12 = vector.broadcast %cst_6 : f32 to vector<128x2xf32>
    %13 = arith.maximumf %11, %12 : vector<128x2xf32>
    %c128 = arith.constant 128 : index
    %c0_7 = arith.constant 0 : index
    %14 = vector.load %arg2[%c128, %c0_7] : memref<264x128xbf16, #tpu.memory_space<vmem>>, vector<128x128xbf16>
    %15 = arith.truncf %13 : vector<128x2xf32> to vector<128x2xbf16>
    %cst_8 = arith.constant dense<0.000000e+00> : vector<128x2xf32>
    %16 = tpu.matmul %14, %15, %cst_8 {dimension_numbers = #tpu.dot_dimension_numbers<[1], [0], [0], [1], [0, 0, 1, 1], [], []>} : vector<128x128xbf16>, vector<128x2xbf16>, vector<128x2xf32> -> vector<128x2xf32>
    %17 = vector.broadcast %6 : vector<128x1xf32> to vector<128x2xf32>
    %18 = arith.addf %16, %17 : vector<128x2xf32>
    %cst_9 = arith.constant 0.000000e+00 : f32
    %19 = vector.broadcast %cst_9 : f32 to vector<128x2xf32>
    %20 = arith.maximumf %18, %19 : vector<128x2xf32>
    %c256 = arith.constant 256 : index
    %c0_10 = arith.constant 0 : index
    %21 = vector.load %arg2[%c256, %c0_10] : memref<264x128xbf16, #tpu.memory_space<vmem>>, vector<2x128xbf16>
    %22 = arith.truncf %20 : vector<128x2xf32> to vector<128x2xbf16>
    %cst_11 = arith.constant dense<0.000000e+00> : vector<2x2xf32>
    %23 = tpu.matmul %21, %22, %cst_11 {dimension_numbers = #tpu.dot_dimension_numbers<[1], [0], [0], [1], [0, 0, 1, 1], [], []>} : vector<2x128xbf16>, vector<128x2xbf16>, vector<2x2xf32> -> vector<2x2xf32>
    %24 = vector.broadcast %8 : vector<2x1xf32> to vector<2x2xf32>
    %25 = arith.addf %23, %24 : vector<2x2xf32>
    %c0_12 = arith.constant 0 : index
    %c0_13 = arith.constant 0 : index
    %26 = vector.load %arg3[%c0_12, %c0_13] : memref<2x2xf32, #tpu.memory_space<vmem>>, vector<2x2xf32>
    tpu.vector_store %arg3[%c0_12, %c0_13], %25 {strides = array<i32>} : memref<2x2xf32, #tpu.memory_space<vmem>>, vector<2x2xf32>,
    return
  }
  func.func @transform_0(%arg0: i32) -> (i32, i32) {
    %c0_i32 = arith.constant 0 : i32
    %c0_i32_0 = arith.constant 0 : i32
    return %c0_i32, %arg0 : i32, i32
  }
  func.func @transform_1(%arg0: i32) -> (i32, i32) {
    %c0_i32 = arith.constant 0 : i32
    %c0_i32_0 = arith.constant 0 : i32
    %c0_i32_1 = arith.constant 0 : i32
    return %c0_i32, %c0_i32_0 : i32, i32
  }
  func.func @transform_2(%arg0: i32) -> (i32, i32) {
    %c0_i32 = arith.constant 0 : i32
    %c0_i32_0 = arith.constant 0 : i32
    return %c0_i32, %arg0 : i32, i32
  }
}

</mosaic_0001>

<llo_original>
// kernel: tpu_custom_call.1
$region0: #{tpu_custom_call.1}
  #allocation0 [shape = 'u32[]', space=smem, size = 0x4, offset = 0x4, fixed_abs, tag = 'smem constant byte address 0x4 - core index']
  #allocation1 [shape = 'u32[72,128]{1,0:T(1,128)}', space=vmem, size = 0x9000, scoped, tag = 'internal scratch']
  %s0 = inlined_call_operand.vmem [shape: f32[4,2], index: 0, kind: input, shape index: {}]
  %s1 = inlined_call_operand.hbm [shape: bf16[264,128], index: 1, kind: input, shape index: {}]
  %s2 = inlined_call_operand.hbm [shape: f32[2,2], index: 2, kind: output, shape index: {}]
  %s3 = sld [smem:[#allocation0]]
  $region22: #{tpu_custom_call.1} parent=0
    _
  %s5 = ssub.s32 1, %s3
  %s6 = scalar_select 0, %s5, %s3
  $region1: #{tpu_custom_call.1} parent=0
    #allocation2 [shape = 'u8[67584]{0}', space=vmem, size = 0x10800, scoped, tag = 'input window, operand 1, single buffered']
    #allocation3 [shape = 's32[1]{0}', space=sflag, size = 0x4, scoped, tag = 'scoped memory for tpu_custom_call.1']
    #allocation4 [shape = 's32[1]{0}', space=sflag, size = 0x4, scoped, tag = 'scoped memory for tpu_custom_call.1']
    #allocation5 [shape = 'u8[1024]{0}', space=vmem, size = 0x400, scoped, tag = 'output window, operand 0, single buffered']
    %7 = vsyncpa [#allocation3], 0
    %8 = vsyncpa [#allocation4], 0
    // Predicated region
    $region2: #{tpu_custom_call.1} parent=1 // pred_check
      _
    $region3: #{tpu_custom_call.1} parent=1 // pred_check_branch
      %10 = sbr.rel (0) target = $region5
    $region4: #{tpu_custom_call.1} parent=1 // pred_region
      _
    $region5: #{tpu_custom_call.1} parent=1 // pred_fallthru
      _
    // Predicated region
    $region6: #{tpu_custom_call.1} parent=1 // pred_check
      _
    $region7: #{tpu_custom_call.1} parent=1 // pred_check_branch
      %12 = sbr.rel (0) target = $region9
    $region8: #{tpu_custom_call.1} parent=1 // pred_region
      %14 = vsyncadd [#allocation3], 0
      %s15 = sshll.u32 %s1, 4
      %s16 = int_to_ptr.hbm [resolvable:$true] %s15
      %s17 = sshll.u32 [#allocation2], 4
      %s18 = int_to_ptr.vmem [resolvable:$true] %s17
      %23 = dma.hbm_to_vmem [thread:$0]  %s16, 2112, %s18, [#allocation3], 64, 64, 4
    $region9: #{tpu_custom_call.1} parent=1 // pred_fallthru
      _
    // Predicated region
    $region10: #{tpu_custom_call.1} parent=1 // pred_check
      _
    $region11: #{tpu_custom_call.1} parent=1 // pred_check_branch
      %25 = sbr.rel (0) target = $region13
    $region12: #{tpu_custom_call.1} parent=1 // pred_region
      %27 = dma.done [#allocation3], 2112
    $region13: #{tpu_custom_call.1} parent=1 // pred_fallthru
      _
    %v29 = vld [vmem:[%s0] sm:$0xf]
    %v30 = vpack.c.bf16 %v29, %v29
    %v31 = vld [vmem:[#allocation2] sm:$0xf]
    %v32 = vld [vmem:[#allocation2 + $0x4] sm:$0xf]
    %v33 = vld [vmem:[#allocation2 + $0x8] sm:$0xf]
    %v34 = vld [vmem:[#allocation2 + $0xc] sm:$0xf]
    %v35 = vld [vmem:[#allocation2 + $0x10] sm:$0xf]
    %v36 = vld [vmem:[#allocation2 + $0x14] sm:$0xf]
    %v37 = vld [vmem:[#allocation2 + $0x18] sm:$0xf]
    %v38 = vld [vmem:[#allocation2 + $0x1c] sm:$0xf]
    %v39 = vld [vmem:[#allocation2 + $0x20] sm:$0xf]
    %v40 = vld [vmem:[#allocation2 + $0x24] sm:$0xf]
    %v41 = vld [vmem:[#allocation2 + $0x28] sm:$0xf]
    %v42 = vld [vmem:[#allocation2 + $0x2c] sm:$0xf]
    %v43 = vld [vmem:[#allocation2 + $0x30] sm:$0xf]
    %v44 = vld [vmem:[#allocation2 + $0x34] sm:$0xf]
    %v45 = vld [vmem:[#allocation2 + $0x38] sm:$0xf]
    %v46 = vld [vmem:[#allocation2 + $0x3c] sm:$0xf]
    %v47 = vunpack.c.l.bf16 %v31
    %v48 = vunpack.c.l.bf16 %v32
    %v49 = vunpack.c.l.bf16 %v33
    %v50 = vunpack.c.l.bf16 %v34
    %v51 = vunpack.c.l.bf16 %v35
    %v52 = vunpack.c.l.bf16 %v36
    %v53 = vunpack.c.l.bf16 %v37
    %v54 = vunpack.c.l.bf16 %v38
    %v55 = vunpack.c.l.bf16 %v39
    %v56 = vunpack.c.l.bf16 %v40
    %v57 = vunpack.c.l.bf16 %v41
    %v58 = vunpack.c.l.bf16 %v42
    %v59 = vunpack.c.l.bf16 %v43
    %v60 = vunpack.c.l.bf16 %v44
    %v61 = vunpack.c.l.bf16 %v45
    %v62 = vunpack.c.l.bf16 %v46
    %v63 = vld [vmem:[#allocation2] sm:$0x1]
    %v64 = vunpack.c.l.bf16 %v63
    %66 = vset.pattern.permute.xlu0 4
    %67 = vperm.xlu0 %66, %v47
    %v68 = vpop.permute.xlu0 %67
    %71 = vset.pattern.permute.xlu0 4
    %72 = vperm.xlu0 %71, %v48
    %v73 = vpop.permute.xlu0 %72
    %76 = vset.pattern.permute.xlu0 4
    %77 = vperm.xlu0 %76, %v49
    %v78 = vpop.permute.xlu0 %77
    %81 = vset.pattern.permute.xlu0 4
    %82 = vperm.xlu0 %81, %v50
    %v83 = vpop.permute.xlu0 %82
    %86 = vset.pattern.permute.xlu0 4
    %87 = vperm.xlu0 %86, %v51
    %v88 = vpop.permute.xlu0 %87
    %91 = vset.pattern.permute.xlu0 4
    %92 = vperm.xlu0 %91, %v52
    %v93 = vpop.permute.xlu0 %92
    %96 = vset.pattern.permute.xlu0 4
    %97 = vperm.xlu0 %96, %v53
    %v98 = vpop.permute.xlu0 %97
    %101 = vset.pattern.permute.xlu0 4
    %102 = vperm.xlu0 %101, %v54
    %v103 = vpop.permute.xlu0 %102
    %106 = vset.pattern.permute.xlu0 4
    %107 = vperm.xlu0 %106, %v55
    %v108 = vpop.permute.xlu0 %107
    %111 = vset.pattern.permute.xlu0 4
    %112 = vperm.xlu0 %111, %v56
    %v113 = vpop.permute.xlu0 %112
    %116 = vset.pattern.permute.xlu0 4
    %117 = vperm.xlu0 %116, %v57
    %v118 = vpop.permute.xlu0 %117
    %121 = vset.pattern.permute.xlu0 4
    %122 = vperm.xlu0 %121, %v58
    %v123 = vpop.permute.xlu0 %122
    %126 = vset.pattern.permute.xlu0 4
    %127 = vperm.xlu0 %126, %v59
    %v128 = vpop.permute.xlu0 %127
    %131 = vset.pattern.permute.xlu0 4
    %132 = vperm.xlu0 %131, %v60
    %v133 = vpop.permute.xlu0 %132
    %136 = vset.pattern.permute.xlu0 4
    %137 = vperm.xlu0 %136, %v61
    %v138 = vpop.permute.xlu0 %137
    %141 = vset.pattern.permute.xlu0 4
    %142 = vperm.xlu0 %141, %v62
    %v143 = vpop.permute.xlu0 %142
    %v161 = vunpack.c.l.b16 %v31
    %v162 = vunpack.c.l.b16 %v32
    %v163 = vunpack.c.l.b16 %v33
    %v164 = vunpack.c.l.b16 %v34
    %v165 = vunpack.c.l.b16 %v35
    %v166 = vunpack.c.l.b16 %v36
    %v167 = vunpack.c.l.b16 %v37
    %v168 = vunpack.c.l.b16 %v38
    %v169 = vunpack.c.l.b16 %v39
    %v170 = vunpack.c.l.b16 %v40
    %v171 = vunpack.c.l.b16 %v41
    %v172 = vunpack.c.l.b16 %v42
    %v173 = vunpack.c.l.b16 %v43
    %v174 = vunpack.c.l.b16 %v44
    %v175 = vunpack.c.l.b16 %v45
    %v176 = vunpack.c.l.b16 %v46
    %v177 = vpack.c.b16 %v162, %v161
    %v178 = vpack.c.b16 %v164, %v163
    %v179 = vpack.c.b16 %v166, %v165
    %v180 = vpack.c.b16 %v168, %v167
    %v181 = vpack.c.b16 %v170, %v169
    %v182 = vpack.c.b16 %v172, %v171
    %v183 = vpack.c.b16 %v174, %v173
    %v184 = vpack.c.b16 %v176, %v175
    %vm185 = vcmask 31744
    %v187 = vsel %vm185, %v177, 0
    %v190 = vsel %vm185, %v178, 0
    %v193 = vsel %vm185, %v179, 0
    %v196 = vsel %vm185, %v180, 0
    %v199 = vsel %vm185, %v181, 0
    %v202 = vsel %vm185, %v182, 0
    %v205 = vsel %vm185, %v183, 0
    %v208 = vsel %vm185, %v184, 0
    %vm210 = vcmask 1041408
    %v212 = vsel %vm210, %v30, 0
    %214 = vmatpush.bf16.msra.mxu0 0
    %215 = vmatpush.bf16.msra.mxu0 0
    %216 = vmatpush.bf16.msra.mxu0 0
    %217 = vmatpush.bf16.msra.mxu0 0
    %218 = vmatpush.bf16.msra.mxu0 0
    %219 = vmatpush.bf16.msra.mxu0 0
    %220 = vmatpush.bf16.msra.mxu0 0
    %221 = vmatpush.bf16.msra.mxu0 %v212
    %222 = vmatmul.bf16.gmra.mxu0 %v187
    %v223 = vpop.f32.mrf.mxu0
    %v224 = vadd.f32 %v68, %v223
    %v225 = vpop.f32.mrf.mxu0
    %v226 = vadd.f32 %v73, %v225
    %227 = vmatmul.bf16.gmra.mxu0 %v190
    %v228 = vpop.f32.mrf.mxu0
    %v229 = vadd.f32 %v78, %v228
    %v230 = vpop.f32.mrf.mxu0
    %v231 = vadd.f32 %v83, %v230
    %232 = vmatmul.bf16.gmra.mxu0 %v193
    %v233 = vpop.f32.mrf.mxu0
    %v234 = vadd.f32 %v88, %v233
    %v235 = vpop.f32.mrf.mxu0
    %v236 = vadd.f32 %v93, %v235
    %237 = vmatmul.bf16.gmra.mxu0 %v196
    %v238 = vpop.f32.mrf.mxu0
    %v239 = vadd.f32 %v98, %v238
    %v240 = vpop.f32.mrf.mxu0
    %v241 = vadd.f32 %v103, %v240
    %242 = vmatmul.bf16.gmra.mxu0 %v199
    %v243 = vpop.f32.mrf.mxu0
    %v244 = vadd.f32 %v108, %v243
    %v245 = vpop.f32.mrf.mxu0
    %v246 = vadd.f32 %v113, %v245
    %247 = vmatmul.bf16.gmra.mxu0 %v202
    %v248 = vpop.f32.mrf.mxu0
    %v249 = vadd.f32 %v118, %v248
    %v250 = vpop.f32.mrf.mxu0
    %v251 = vadd.f32 %v123, %v250
    %252 = vmatmul.bf16.gmra.mxu0 %v205
    %v253 = vpop.f32.mrf.mxu0
    %v254 = vadd.f32 %v128, %v253
    %v255 = vpop.f32.mrf.mxu0
    %v256 = vadd.f32 %v133, %v255
    %257 = vmatmul.bf16.gmra.mxu0 %v208
    %v258 = vpop.f32.mrf.mxu0
    %v259 = vadd.f32 %v138, %v258
    %v260 = vpop.f32.mrf.mxu0
    %v261 = vadd.f32 %v143, %v260
    %262 = vdwg.mxu0
    %v263 = vmax.f32 %v224, 0.0
    %v264 = vmax.f32 %v226, 0.0
    %v265 = vmax.f32 %v229, 0.0
    %v266 = vmax.f32 %v231, 0.0
    %v267 = vmax.f32 %v234, 0.0
    %v268 = vmax.f32 %v236, 0.0
    %v269 = vmax.f32 %v239, 0.0
    %v270 = vmax.f32 %v241, 0.0
    %v271 = vmax.f32 %v244, 0.0
    %v272 = vmax.f32 %v246, 0.0
    %v273 = vmax.f32 %v249, 0.0
    %v274 = vmax.f32 %v251, 0.0
    %v275 = vmax.f32 %v254, 0.0
    %v276 = vmax.f32 %v256, 0.0
    %v277 = vmax.f32 %v259, 0.0
    %v278 = vmax.f32 %v261, 0.0
    %v279 = vld [vmem:[#allocation2 + $0x40] sm:$0xf]
    %v280 = vld [vmem:[#allocation2 + $0x44] sm:$0xf]
    %v281 = vld [vmem:[#allocation2 + $0x48] sm:$0xf]
    %v282 = vld [vmem:[#allocation2 + $0x4c] sm:$0xf]
    %v283 = vld [vmem:[#allocation2 + $0x50] sm:$0xf]
    %v284 = vld [vmem:[#allocation2 + $0x54] sm:$0xf]
    %v285 = vld [vmem:[#allocation2 + $0x58] sm:$0xf]
    %v286 = vld [vmem:[#allocation2 + $0x5c] sm:$0xf]
    %v287 = vld [vmem:[#allocation2 + $0x60] sm:$0xf]
    %v288 = vld [vmem:[#allocation2 + $0x64] sm:$0xf]
    %v289 = vld [vmem:[#allocation2 + $0x68] sm:$0xf]
    %v290 = vld [vmem:[#allocation2 + $0x6c] sm:$0xf]
    %v291 = vld [vmem:[#allocation2 + $0x70] sm:$0xf]
    %v292 = vld [vmem:[#allocation2 + $0x74] sm:$0xf]
    %v293 = vld [vmem:[#allocation2 + $0x78] sm:$0xf]
    %v294 = vld [vmem:[#allocation2 + $0x7c] sm:$0xf]
    %v295 = vpack.c.bf16 %v264, %v263
    %v296 = vpack.c.bf16 %v266, %v265
    %v297 = vpack.c.bf16 %v268, %v267
    %v298 = vpack.c.bf16 %v270, %v269
    %v299 = vpack.c.bf16 %v272, %v271
    %v300 = vpack.c.bf16 %v274, %v273
    %v301 = vpack.c.bf16 %v276, %v275
    %v302 = vpack.c.bf16 %v278, %v277
    %303 = vset.pattern.permute.xlu0 5
    %304 = vperm.xlu0 %303, %v47
    %v305 = vpop.permute.xlu0 %304
    %307 = vset.pattern.permute.xlu0 5
    %308 = vperm.xlu0 %307, %v48
    %v309 = vpop.permute.xlu0 %308
    %311 = vset.pattern.permute.xlu0 5
    %312 = vperm.xlu0 %311, %v49
    %v313 = vpop.permute.xlu0 %312
    %315 = vset.pattern.permute.xlu0 5
    %316 = vperm.xlu0 %315, %v50
    %v317 = vpop.permute.xlu0 %316
    %319 = vset.pattern.permute.xlu0 5
    %320 = vperm.xlu0 %319, %v51
    %v321 = vpop.permute.xlu0 %320
    %323 = vset.pattern.permute.xlu0 5
    %324 = vperm.xlu0 %323, %v52
    %v325 = vpop.permute.xlu0 %324
    %327 = vset.pattern.permute.xlu0 5
    %328 = vperm.xlu0 %327, %v53
    %v329 = vpop.permute.xlu0 %328
    %331 = vset.pattern.permute.xlu0 5
    %332 = vperm.xlu0 %331, %v54
    %v333 = vpop.permute.xlu0 %332
    %335 = vset.pattern.permute.xlu0 5
    %336 = vperm.xlu0 %335, %v55
    %v337 = vpop.permute.xlu0 %336
    %339 = vset.pattern.permute.xlu0 5
    %340 = vperm.xlu0 %339, %v56
    %v341 = vpop.permute.xlu0 %340
    %343 = vset.pattern.permute.xlu0 5
    %344 = vperm.xlu0 %343, %v57
    %v345 = vpop.permute.xlu0 %344
    %347 = vset.pattern.permute.xlu0 5
    %348 = vperm.xlu0 %347, %v58
    %v349 = vpop.permute.xlu0 %348
    %351 = vset.pattern.permute.xlu0 5
    %352 = vperm.xlu0 %351, %v59
    %v353 = vpop.permute.xlu0 %352
    %355 = vset.pattern.permute.xlu0 5
    %356 = vperm.xlu0 %355, %v60
    %v357 = vpop.permute.xlu0 %356
    %359 = vset.pattern.permute.xlu0 5
    %360 = vperm.xlu0 %359, %v61
    %v361 = vpop.permute.xlu0 %360
    %363 = vset.pattern.permute.xlu0 5
    %364 = vperm.xlu0 %363, %v62
    %v365 = vpop.permute.xlu0 %364
    %v383 = vunpack.c.l.b16 %v279
    %v384 = vunpack.c.l.b16 %v280
    %v385 = vunpack.c.l.b16 %v281
    %v386 = vunpack.c.l.b16 %v282
    %v387 = vunpack.c.l.b16 %v283
    %v388 = vunpack.c.l.b16 %v284
    %v389 = vunpack.c.l.b16 %v285
    %v390 = vunpack.c.l.b16 %v286
    %v391 = vunpack.c.l.b16 %v287
    %v392 = vunpack.c.l.b16 %v288
    %v393 = vunpack.c.l.b16 %v289
    %v394 = vunpack.c.l.b16 %v290
    %v395 = vunpack.c.l.b16 %v291
    %v396 = vunpack.c.l.b16 %v292
    %v397 = vunpack.c.l.b16 %v293
    %v398 = vunpack.c.l.b16 %v294
    %v399 = vpack.c.b16 %v384, %v383
    %v400 = vpack.c.b16 %v386, %v385
    %v401 = vpack.c.b16 %v388, %v387
    %v402 = vpack.c.b16 %v390, %v389
    %v403 = vpack.c.b16 %v392, %v391
    %v404 = vpack.c.b16 %v394, %v393
    %v405 = vpack.c.b16 %v396, %v395
    %v406 = vpack.c.b16 %v398, %v397
    %415 = vmatpush.bf16.msra.mxu0 %v302
    %416 = vmatpush.bf16.msra.mxu0 %v301
    %417 = vmatpush.bf16.msra.mxu0 %v300
    %418 = vmatpush.bf16.msra.mxu0 %v299
    %419 = vmatpush.bf16.msra.mxu0 %v298
    %420 = vmatpush.bf16.msra.mxu0 %v297
    %421 = vmatpush.bf16.msra.mxu0 %v296
    %422 = vmatpush.bf16.msra.mxu0 %v295
    %423 = vmatmul.bf16.gmra.mxu0 %v399
    %v424 = vpop.f32.mrf.mxu0
    %v425 = vadd.f32 %v305, %v424
    %v426 = vpop.f32.mrf.mxu0
    %v427 = vadd.f32 %v309, %v426
    %428 = vmatmul.bf16.gmra.mxu0 %v400
    %v429 = vpop.f32.mrf.mxu0
    %v430 = vadd.f32 %v313, %v429
    %v431 = vpop.f32.mrf.mxu0
    %v432 = vadd.f32 %v317, %v431
    %433 = vmatmul.bf16.gmra.mxu0 %v401
    %v434 = vpop.f32.mrf.mxu0
    %v435 = vadd.f32 %v321, %v434
    %v436 = vpop.f32.mrf.mxu0
    %v437 = vadd.f32 %v325, %v436
    %438 = vmatmul.bf16.gmra.mxu0 %v402
    %v439 = vpop.f32.mrf.mxu0
    %v440 = vadd.f32 %v329, %v439
    %v441 = vpop.f32.mrf.mxu0
    %v442 = vadd.f32 %v333, %v441
    %443 = vmatmul.bf16.gmra.mxu0 %v403
    %v444 = vpop.f32.mrf.mxu0
    %v445 = vadd.f32 %v337, %v444
    %v446 = vpop.f32.mrf.mxu0
    %v447 = vadd.f32 %v341, %v446
    %448 = vmatmul.bf16.gmra.mxu0 %v404
    %v449 = vpop.f32.mrf.mxu0
    %v450 = vadd.f32 %v345, %v449
    %v451 = vpop.f32.mrf.mxu0
    %v452 = vadd.f32 %v349, %v451
    %453 = vmatmul.bf16.gmra.mxu0 %v405
    %v454 = vpop.f32.mrf.mxu0
    %v455 = vadd.f32 %v353, %v454
    %v456 = vpop.f32.mrf.mxu0
    %v457 = vadd.f32 %v357, %v456
    %458 = vmatmul.bf16.gmra.mxu0 %v406
    %v459 = vpop.f32.mrf.mxu0
    %v460 = vadd.f32 %v361, %v459
    %v461 = vpop.f32.mrf.mxu0
    %v462 = vadd.f32 %v365, %v461
    %463 = vdwg.mxu0
    %v464 = vmax.f32 %v425, 0.0
    %v465 = vmax.f32 %v427, 0.0
    %v466 = vmax.f32 %v430, 0.0
    %v467 = vmax.f32 %v432, 0.0
    %v468 = vmax.f32 %v435, 0.0
    %v469 = vmax.f32 %v437, 0.0
    %v470 = vmax.f32 %v440, 0.0
    %v471 = vmax.f32 %v442, 0.0
    %v472 = vmax.f32 %v445, 0.0
    %v473 = vmax.f32 %v447, 0.0
    %v474 = vmax.f32 %v450, 0.0
    %v475 = vmax.f32 %v452, 0.0
    %v476 = vmax.f32 %v455, 0.0
    %v477 = vmax.f32 %v457, 0.0
    %v478 = vmax.f32 %v460, 0.0
    %v479 = vmax.f32 %v462, 0.0
    %v480 = vld [vmem:[#allocation2 + $0x80] sm:$0x1]
    %v481 = vpack.c.bf16 %v465, %v464
    %v482 = vpack.c.bf16 %v467, %v466
    %v483 = vpack.c.bf16 %v469, %v468
    %v484 = vpack.c.bf16 %v471, %v470
    %v485 = vpack.c.bf16 %v473, %v472
    %v486 = vpack.c.bf16 %v475, %v474
    %v487 = vpack.c.bf16 %v477, %v476
    %v488 = vpack.c.bf16 %v479, %v478
    %490 = vset.pattern.permute.xlu0 6
    %491 = vperm.xlu0 %490, %v64
    %v492 = vpop.permute.xlu0 %491
    %494 = vmatpush.bf16.msra.mxu0 %v488
    %495 = vmatpush.bf16.msra.mxu0 %v487
    %496 = vmatpush.bf16.msra.mxu0 %v486
    %497 = vmatpush.bf16.msra.mxu0 %v485
    %498 = vmatpush.bf16.msra.mxu0 %v484
    %499 = vmatpush.bf16.msra.mxu0 %v483
    %500 = vmatpush.bf16.msra.mxu0 %v482
    %501 = vmatpush.bf16.msra.mxu0 %v481
    %502 = vmatmul.bf16.gmra.mxu0 %v480
    %v503 = vpop.f32.mrf.mxu0
    %v504 = vadd.f32 %v492, %v503
    %v505 = vpop.f32.mrf.mxu0
    %506 = vdwg.mxu0
    %vm507 = vcmask 9216
    %508 = vst.msk [vmem:[#allocation5] sm:$0x3] %vm507, %v504
    // Predicated region
    $region14: #{tpu_custom_call.1} parent=1 // pred_check
      _
    $region15: #{tpu_custom_call.1} parent=1 // pred_check_branch
      %510 = sbr.rel (0) target = $region17
    $region16: #{tpu_custom_call.1} parent=1 // pred_region
      %512 = vsyncadd [#allocation4], 0
      %s514 = sshll.u32 [#allocation5], 4
      %s515 = int_to_ptr.vmem [resolvable:$true] %s514
      %s516 = sshll.u32 %s2, 4
      %s517 = int_to_ptr.hbm [resolvable:$true] %s516
      %519 = dma.vmem_to_hbm [thread:$0]  %s515, 32, %s517, [#allocation4]
    $region17: #{tpu_custom_call.1} parent=1 // pred_fallthru
      _
    // Predicated region
    $region18: #{tpu_custom_call.1} parent=1 // pred_check
      _
    $region19: #{tpu_custom_call.1} parent=1 // pred_check_branch
      %521 = sbr.rel (0) target = $region21
    $region20: #{tpu_custom_call.1} parent=1 // pred_region
      %523 = dma.done [#allocation4], 32
    $region21: #{tpu_custom_call.1} parent=1 // pred_fallthru
      _
    %524 = vsyncpa [#allocation3], 1
    %525 = vsyncpa [#allocation4], 1

</llo_original>
